<compile_context>
chip_gen: v5e
topology: v5e:2x2
jax: 0.10.0
libtpu: 0.0.40
codegen_flags: <defaults>
</compile_context>

<pallas_src>
import functools

import numpy as np
import jax
import jax.numpy as jnp
from jax.experimental import pallas as pl
from jax.experimental.pallas import tpu as pltpu


_FAR = 1.0e6  # coordinate for padded (dummy) points -> softmax weight underflows to 0


def _round_up(x, m):
    return (x + m - 1) // m * m


def _bf16_eup_supported():
    """bf16 VPU/EUP exists on v6e / v7x; keep f32 on v5e and older."""
    try:
        kind = jax.devices()[0].device_kind.lower()
    except Exception:
        return False
    return ("v6" in kind) or ("v7" in kind)


def _bayes_loss_kernel(d_ref, pt_ref, cell_ref, dens_ref, loss_ref, acc_pts, acc_bg, *,
                       sigma, use_bg, exp_bf16):
    """Grid = (batch image, M-chunk).

    d_ref    : (B,) SMEM scalar-prefetch, st_size * bg_ratio per image
    pt_ref   : (1, N_pad, 8)  cols = [x, y, -(x^2+y^2)/(2s^2), 1, target, 0, 0, 0]
    cell_ref : (8, Mt)        rows = [cx/s^2, cy/s^2, 1, -(cx^2+cy^2)/(2s^2), 0...]
    dens_ref : (1, 1, Mt)     flattened predicted density chunk for this image
    loss_ref : (1, 1, 1)      per-image loss (written at the last M-chunk)
    acc_pts  : (N_pad, 128)   running per-point pre_count, folded per 128-lane group
    acc_bg   : (1, 1)         running pre_count for the background "point"
    """
    b = pl.program_id(0)
    m = pl.program_id(1)
    nm = pl.num_programs(1)

    @pl.when(m == 0)
    def _():
        acc_pts[...] = jnp.zeros_like(acc_pts)
        acc_bg[...] = jnp.zeros_like(acc_bg)

    pts = pt_ref[0]                      # (N_pad, 8)
    cell = cell_ref[...]                 # (8, Mt)
    dens = dens_ref[0]                   # (1, Mt)

    # logits = -squared_distance / (2 sigma^2) via a single (N_pad,8)x(8,Mt) MXU matmul.
    # f32 operands + HIGHEST precision: the expanded-square form is cancellation
    # sensitive, do NOT let the MXU truncate to bf16 here.
    logits = jnp.dot(pts, cell, preferred_element_type=jnp.float32,
                     precision=jax.lax.Precision.HIGHEST)          # (N_pad, Mt)

    mx_pts = jnp.max(logits, axis=0, keepdims=True)                # (1, Mt) == -min(dis)/(2s^2)

    two_s2 = 2.0 * sigma * sigma
    if use_bg:
        # reuse the column max to reconstruct the per-column min squared distance
        min_dis = jnp.maximum(-mx_pts * two_s2, 0.0)               # (1, Mt)
        d = d_ref[b]                                               # SMEM scalar
        bg_logit = -((d - jnp.sqrt(min_dis)) ** 2) * (1.0 / two_s2)
        mx = jnp.maximum(mx_pts, bg_logit)
    else:
        mx = mx_pts

    shifted = logits - mx                                          # (N_pad, Mt)
    if exp_bf16:
        e = jnp.exp(shifted.astype(jnp.bfloat16))                  # half the EUP pushes
        denom = jnp.sum(e, axis=0, keepdims=True, dtype=jnp.float32)
    else:
        e = jnp.exp(shifted)
        denom = jnp.sum(e, axis=0, keepdims=True)
    if use_bg:
        e_bg = jnp.exp(bg_logit - mx)                              # (1, Mt) f32
        denom = denom + e_bg

    # softmax-weight * density fused via one approx reciprocal (no per-element divide)
    w = dens * pl.reciprocal(denom, approx=True)                   # (1, Mt) f32
    ew = e * w.astype(e.dtype)                                     # (N_pad, Mt)

    # Fold lanes into one 128-wide group with plain VALU vreg adds; defer the single
    # cross-lane (XLU) reduction to the last-chunk epilogue.
    n_groups = ew.shape[1] // 128
    part = ew[:, 0:128]
    for g in range(1, n_groups):
        part = part + ew[:, g * 128:(g + 1) * 128]
    acc_pts[...] += part.astype(jnp.float32)

    if use_bg:
        acc_bg[...] += jnp.sum(e_bg * w, axis=1, keepdims=True)    # (1, 1)

    @pl.when(m == nm - 1)
    def _():
        pre = jnp.sum(acc_pts[...], axis=1, keepdims=True)         # (N_pad, 1) XLU reduce, once
        tgt = pts[:, 4:5]                                          # (N_pad, 1)
        per_img = jnp.sum(jnp.abs(tgt - pre), axis=0, keepdims=True)   # (1, 1)
        if use_bg:
            per_img = per_img + jnp.abs(acc_bg[...])               # bg target is 0
        loss_ref[0] = per_img


def criterion_forward(pred, points, target, st_sizes, *, sigma, crop_size,
                      downsample_ratio, background_ratio, use_background,
                      m_tile=None, exp_dtype=None):
    """JAX/Pallas equivalent of Criterion.forward.

    pred     : (B, 1, C, C) float32, NCHW density prediction (C = crop_size // downsample_ratio)
    points   : (B, N, 2) float32, per-image annotated points (x, y), N > 0
    target   : (B, N) float32, per-point target counts
    st_sizes : (B,) float32
    returns scalar float32 loss (mean over images)
    """
    assert crop_size % downsample_ratio == 0
    B, _, H, W = pred.shape
    C = crop_size // downsample_ratio
    assert H == C and W == C
    M = C * C
    N = points.shape[1]
    assert N > 0
    sigma = float(sigma)

    if exp_dtype is None:
        exp_bf16 = _bf16_eup_supported()
    else:
        exp_bf16 = jnp.dtype(exp_dtype) == jnp.dtype(jnp.bfloat16)

    n_pad = _round_up(N, 8)

    # --- M tiling: lane-dense, as large as comfortably fits VMEM (aim for grid_m == 1) ---
    m128 = _round_up(M, 128)
    if m_tile is None:
        # per-column VMEM cost: ~3 f32 (N_pad, Mt) intermediates + double-buffered
        # cell (8, Mt) and density (1, Mt) input blocks.
        bytes_per_col = 3 * 4 * n_pad + 2 * (8 * 4) + 2 * 4
        budget = 24 * 1024 * 1024
        cap = max(128, (budget // bytes_per_col) // 128 * 128)
        m_tile = min(m128, cap)
    m_tile = max(128, _round_up(int(m_tile), 128))
    m_tile = min(m_tile, m128)
    m_pad = _round_up(M, m_tile)
    grid_m = m_pad // m_tile

    inv_s2 = 1.0 / (sigma * sigma)

    # --- shared per-cell table (squared terms hoisted; rows feed the MXU contraction) ---
    stride = float(downsample_ratio)
    cood = jnp.arange(0, crop_size, downsample_ratio, dtype=jnp.float32) + stride / 2.0  # (C,)
    cood_y = jnp.repeat(cood, C)          # flat index = i*C + j, i -> y (row-major)
    cood_x = jnp.tile(cood, C)
    pad_m = m_pad - M
    if pad_m:
        cood_x = jnp.pad(cood_x, (0, pad_m))
        cood_y = jnp.pad(cood_y, (0, pad_m))
    cell_tbl = jnp.zeros((8, m_pad), jnp.float32)
    cell_tbl = cell_tbl.at[0].set(cood_x * inv_s2)
    cell_tbl = cell_tbl.at[1].set(cood_y * inv_s2)
    cell_tbl = cell_tbl.at[2].set(1.0)
    cell_tbl = cell_tbl.at[3].set(-(cood_x * cood_x + cood_y * cood_y) * (0.5 * inv_s2))

    # --- packed per-point table (one small DMA per grid step) ---
    px = points[:, :, 0].astype(jnp.float32)
    py = points[:, :, 1].astype(jnp.float32)
    tgt = target.astype(jnp.float32)
    pad_n = n_pad - N
    if pad_n:
        # dummy points far away (softmax weight underflows to 0) with target 0
        px = jnp.pad(px, ((0, 0), (0, pad_n)), constant_values=_FAR)
        py = jnp.pad(py, ((0, 0), (0, pad_n)), constant_values=_FAR)
        tgt = jnp.pad(tgt, ((0, 0), (0, pad_n)))
    neg_p_sq = -(px * px + py * py) * (0.5 * inv_s2)
    ones = jnp.ones_like(px)
    zeros = jnp.zeros_like(px)
    pt_tbl = jnp.stack([px, py, neg_p_sq, ones, tgt, zeros, zeros, zeros], axis=-1)  # (B, N_pad, 8)

    # background distance scalar per image -> SMEM scalar prefetch
    d_arr = st_sizes.astype(jnp.float32) * float(background_ratio)                   # (B,)

    dens = pred.reshape(B, 1, M).astype(jnp.float32)
    if pad_m:
        dens = jnp.pad(dens, ((0, 0), (0, 0), (0, pad_m)))   # padded cells -> density 0

    kernel = functools.partial(_bayes_loss_kernel, sigma=sigma,
                               use_bg=bool(use_background), exp_bf16=exp_bf16)

    # TODO(synk): on v7x with B == 1 only one of the 2 TensorCores gets work; splitting the
    # M-chunks across a second "parallel" axis (emitting partial pre_counts, finished in the
    # wrapper) would recover the idle core. Not implemented here.
    per_image = pl.pallas_call(
        kernel,
        out_shape=jax.ShapeDtypeStruct((B, 1, 1), jnp.float32),
        grid_spec=pltpu.PrefetchScalarGridSpec(
            num_scalar_prefetch=1,
            grid=(B, grid_m),
            in_specs=[
                pl.BlockSpec((1, n_pad, 8), lambda b, m, d: (b, 0, 0)),   # point table
                pl.BlockSpec((8, m_tile), lambda b, m, d: (0, m)),        # cell table (shared)
                pl.BlockSpec((1, 1, m_tile), lambda b, m, d: (b, 0, m)),  # density chunk
            ],
            out_specs=pl.BlockSpec((1, 1, 1), lambda b, m, d: (b, 0, 0)),
            scratch_shapes=[
                pltpu.VMEM((n_pad, 128), jnp.float32),   # per-point pre_count (lane groups)
                pltpu.VMEM((1, 1), jnp.float32),         # background pre_count
            ]),
        compiler_params=pltpu.CompilerParams(
            dimension_semantics=("parallel", "arbitrary"),
            vmem_limit_bytes=48 * 1024 * 1024),
    )(d_arr, pt_tbl, cell_tbl, dens)

    return jnp.sum(per_image) / B


# TODO(synk): the PyTorch module's `prob is None` branch (an image with ZERO points:
# pre_count = sum(density), target = [0]) needs data-dependent list semantics and is
# not implemented; images with >= 1 point (including ragged counts, via far-away
# padded points with target 0) are fully handled.


def _reference_loss(pred, points, target, st_sizes, sigma, crop_size, ds, bg_ratio, use_bg):
    """Pure numpy reimplementation of the PyTorch forward (original formulas)."""
    B = pred.shape[0]
    cood = np.arange(0, crop_size, ds, dtype=np.float32) + ds / 2.0
    loss = 0.0
    for b in range(B):
        pts = points[b].astype(np.float32)
        x = pts[:, 0:1]
        y = pts[:, 1:2]
        x_dis = -2.0 * x @ cood[None, :] + x * x + cood * cood
        y_dis = -2.0 * y @ cood[None, :] + y * y + cood * cood
        dis = y_dis[:, :, None] + x_dis[:, None, :]
        dis = dis.reshape(dis.shape[0], -1)
        if use_bg:
            min_dis = np.clip(dis.min(axis=0, keepdims=True), 0.0, None)
            d = st_sizes[b] * bg_ratio
            bg_dis = (d - np.sqrt(min_dis)) ** 2
            dis = np.concatenate([dis, bg_dis], axis=0)
        logits = -dis / (2.0 * sigma ** 2)
        logits = logits - logits.max(axis=0, keepdims=True)
        e = np.exp(logits)
        prob = e / e.sum(axis=0, keepdims=True)
        dens = pred[b].reshape(1, -1)
        pre_count = (dens * prob).sum(axis=1)
        tgt = target[b].astype(np.float32)
        if use_bg:
            tgt = np.concatenate([tgt, np.zeros((1,), np.float32)])
        loss += np.abs(tgt - pre_count).sum()
    return loss / B


if __name__ == "__main__":
    sigma = 8.0
    crop_size = 32
    downsample_ratio = 2          # C = 16, M = 256
    background_ratio = 1.0
    B, N = 2, 5                   # 5 points per image -> padded to 8 inside the wrapper
    C = crop_size // downsample_ratio

    key = jax.random.PRNGKey(0)
    k1, k2, k3 = jax.random.split(key, 3)
    pred = jax.random.uniform(k1, (B, 1, C, C), jnp.float32)          # NCHW density
    points = jax.random.uniform(k2, (B, N, 2), jnp.float32) * crop_size
    target = jax.random.uniform(k3, (B, N), jnp.float32) + 0.5
    st_sizes = jnp.full((B,), float(crop_size), jnp.float32)

    pred_np = np.asarray(pred, np.float32)
    pts_np = np.asarray(points, np.float32)
    tgt_np = np.asarray(target, np.float32)
    st_np = np.asarray(st_sizes, np.float32)

    for use_background in (True, False):
        ref = _reference_loss(pred_np, pts_np, tgt_np, st_np, sigma, crop_size,
                              downsample_ratio, background_ratio, use_background)

        # f32 path, forced 2 M-chunks (exercises the scratch accumulation) -> tight check
        loss32 = criterion_forward(
            pred, points, target, st_sizes,
            sigma=sigma, crop_size=crop_size, downsample_ratio=downsample_ratio,
            background_ratio=background_ratio, use_background=use_background,
            m_tile=128, exp_dtype=jnp.float32)
        loss32 = jax.block_until_ready(loss32)
        assert np.isfinite(float(loss32)), "loss is not finite"
        np.testing.assert_allclose(float(loss32), float(ref), rtol=5e-3, atol=5e-3)

        # auto path: single large tile; bf16 exp on v6e/v7x, f32 elsewhere -> looser check
        loss_auto = criterion_forward(
            pred, points, target, st_sizes,
            sigma=sigma, crop_size=crop_size, downsample_ratio=downsample_ratio,
            background_ratio=background_ratio, use_background=use_background)
        loss_auto = jax.block_until_ready(loss_auto)
        assert np.isfinite(float(loss_auto)), "loss is not finite"
        np.testing.assert_allclose(float(loss_auto), float(ref), rtol=3e-2, atol=3e-2)

    print("KERNEL_OK")
</pallas_src>

<mosaic_0001>
module attributes {stable_mosaic.version = 11 : i64} {
  func.func @_bayes_loss_kernel(%arg0: i32, %arg1: i32, %arg2: memref<2xf32, #tpu.memory_space<smem>>, %arg3: memref<1x8x8xf32, #tpu.memory_space<vmem>>, %arg4: memref<8x128xf32, #tpu.memory_space<vmem>>, %arg5: memref<1x1x128xf32, #tpu.memory_space<vmem>>, %arg6: memref<1x1x1xf32, #tpu.memory_space<vmem>>, %arg7: memref<8x128xf32, #tpu.memory_space<vmem>>, %arg8: memref<1x1xf32, #tpu.memory_space<vmem>>) attributes {dimension_semantics = [#tpu.dimension_semantics<parallel>, #tpu.dimension_semantics<arbitrary>], iteration_bounds = array<i64: 2, 2>, scalar_prefetch = 1 : i64, scratch_operands = 2 : i64, tpu.core_type = #tpu.core_type<tc>, window_params = [{transform_indices = @transform_0, window_bounds = array<i64: 1, 8, 8>}, {transform_indices = @transform_1, window_bounds = array<i64: 8, 128>}, {transform_indices = @transform_2, window_bounds = array<i64: 1, 1, 128>}, {transform_indices = @transform_3, window_bounds = array<i64: 1, 1, 1>}]} {
    %c0_i32 = arith.constant 0 : i32
    %0 = arith.cmpi eq, %arg1, %c0_i32 : i32
    %1 = arith.extui %0 : i1 to i32
    %c0_i32_0 = arith.constant 0 : i32
    %2 = arith.cmpi ne, %1, %c0_i32_0 : i32
    scf.if %2 {
      %cst_25 = arith.constant 0.000000e+00 : f32
      %52 = vector.broadcast %cst_25 : f32 to vector<8x128xf32>
      %c0_26 = arith.constant 0 : index
      %c0_27 = arith.constant 0 : index
      %53 = vector.load %arg7[%c0_26, %c0_27] : memref<8x128xf32, #tpu.memory_space<vmem>>, vector<8x128xf32>
      tpu.vector_store %arg7[%c0_26, %c0_27], %52 {strides = array<i32>} : memref<8x128xf32, #tpu.memory_space<vmem>>, vector<8x128xf32>,
      %cst_28 = arith.constant 0.000000e+00 : f32
      %54 = vector.broadcast %cst_28 : f32 to vector<1x1xf32>
      %c0_29 = arith.constant 0 : index
      %c0_30 = arith.constant 0 : index
      %55 = vector.load %arg8[%c0_29, %c0_30] : memref<1x1xf32, #tpu.memory_space<vmem>>, vector<1x1xf32>
      tpu.vector_store %arg8[%c0_29, %c0_30], %54 {strides = array<i32>} : memref<1x1xf32, #tpu.memory_space<vmem>>, vector<1x1xf32>,
    } else {
    }
    %c0 = arith.constant 0 : index
    %c0_1 = arith.constant 0 : index
    %c0_2 = arith.constant 0 : index
    %3 = vector.load %arg3[%c0, %c0_1, %c0_2] : memref<1x8x8xf32, #tpu.memory_space<vmem>>, vector<1x8x8xf32>
    %4 = vector.shape_cast %3 : vector<1x8x8xf32> to vector<8x8xf32>
    %c0_3 = arith.constant 0 : index
    %c0_4 = arith.constant 0 : index
    %5 = vector.load %arg4[%c0_3, %c0_4] : memref<8x128xf32, #tpu.memory_space<vmem>>, vector<8x128xf32>
    %c0_5 = arith.constant 0 : index
    %c0_6 = arith.constant 0 : index
    %c0_7 = arith.constant 0 : index
    %6 = vector.load %arg5[%c0_5, %c0_6, %c0_7] : memref<1x1x128xf32, #tpu.memory_space<vmem>>, vector<1x1x128xf32>
    %7 = vector.shape_cast %6 : vector<1x1x128xf32> to vector<1x128xf32>
    %cst = arith.constant dense<0.000000e+00> : vector<8x128xf32>
    %8 = tpu.matmul %4, %5, %cst {dimension_numbers = #tpu.dot_dimension_numbers<[1], [0], [0], [1], [0, 0, 1, 1], [], []>, precision = #tpu.contract_precision<fp32>} : vector<8x8xf32>, vector<8x128xf32>, vector<8x128xf32> -> vector<8x128xf32>
    %cst_8 = arith.constant dense<0xFF800000> : vector<128xf32>
    %9 = vector.multi_reduction <maximumf>, %8, %cst_8 [0] : vector<8x128xf32> to vector<128xf32>
    %10 = vector.shape_cast %9 : vector<128xf32> to vector<1x128xf32>
    %cst_9 = arith.constant 0.000000e+00 : f32
    %11 = vector.broadcast %cst_9 : f32 to vector<1x128xf32>
    %12 = arith.subf %11, %10 : vector<1x128xf32>
    %cst_10 = arith.constant 1.280000e+02 : f32
    %13 = vector.broadcast %cst_10 : f32 to vector<1x128xf32>
    %14 = arith.mulf %12, %13 : vector<1x128xf32>
    %cst_11 = arith.constant 0.000000e+00 : f32
    %15 = vector.broadcast %cst_11 : f32 to vector<1x128xf32>
    %16 = arith.maximumf %14, %15 : vector<1x128xf32>
    %17 = arith.index_cast %arg0 : i32 to index
    %18 = memref.load %arg2[%17] : memref<2xf32, #tpu.memory_space<smem>>
    %19 = math.sqrt %16 : vector<1x128xf32>
    %20 = vector.broadcast %18 : f32 to vector<1x128xf32>
    %21 = arith.subf %20, %19 : vector<1x128xf32>
    %22 = arith.mulf %21, %21 : vector<1x128xf32>
    %cst_12 = arith.constant 0.000000e+00 : f32
    %23 = vector.broadcast %cst_12 : f32 to vector<1x128xf32>
    %24 = arith.subf %23, %22 : vector<1x128xf32>
    %cst_13 = arith.constant 7.812500e-03 : f32
    %25 = vector.broadcast %cst_13 : f32 to vector<1x128xf32>
    %26 = arith.mulf %24, %25 : vector<1x128xf32>
    %27 = arith.maximumf %10, %26 : vector<1x128xf32>
    %28 = vector.broadcast %27 : vector<1x128xf32> to vector<8x128xf32>
    %29 = arith.subf %8, %28 : vector<8x128xf32>
    %30 = math.exp %29 : vector<8x128xf32>
    %cst_14 = arith.constant dense<0.000000e+00> : vector<128xf32>
    %31 = vector.multi_reduction <add>, %30, %cst_14 [0] : vector<8x128xf32> to vector<128xf32>
    %32 = vector.shape_cast %31 : vector<128xf32> to vector<1x128xf32>
    %33 = arith.subf %26, %27 : vector<1x128xf32>
    %34 = math.exp %33 : vector<1x128xf32>
    %35 = arith.addf %32, %34 : vector<1x128xf32>
    %36 = tpu.reciprocal %35 {approx = true} : vector<1x128xf32> -> vector<1x128xf32>
    %37 = arith.mulf %7, %36 : vector<1x128xf32>
    %38 = vector.broadcast %37 : vector<1x128xf32> to vector<8x128xf32>
    %39 = arith.mulf %30, %38 : vector<8x128xf32>
    %c0_15 = arith.constant 0 : index
    %c0_16 = arith.constant 0 : index
    %40 = vector.load %arg7[%c0_15, %c0_16] : memref<8x128xf32, #tpu.memory_space<vmem>>, vector<8x128xf32>
    %41 = arith.addf %40, %39 : vector<8x128xf32>
    %c0_17 = arith.constant 0 : index
    %c0_18 = arith.constant 0 : index
    %42 = vector.load %arg7[%c0_17, %c0_18] : memref<8x128xf32, #tpu.memory_space<vmem>>, vector<8x128xf32>
    tpu.vector_store %arg7[%c0_17, %c0_18], %41 {strides = array<i32>} : memref<8x128xf32, #tpu.memory_space<vmem>>, vector<8x128xf32>,
    %c0_19 = arith.constant 0 : index
    %c0_20 = arith.constant 0 : index
    %43 = vector.load %arg8[%c0_19, %c0_20] : memref<1x1xf32, #tpu.memory_space<vmem>>, vector<1x1xf32>
    %44 = arith.mulf %34, %37 : vector<1x128xf32>
    %cst_21 = arith.constant dense<0.000000e+00> : vector<1xf32>
    %45 = vector.multi_reduction <add>, %44, %cst_21 [1] : vector<1x128xf32> to vector<1xf32>
    %46 = vector.shape_cast %45 : vector<1xf32> to vector<1x1xf32>
    %47 = arith.addf %43, %46 : vector<1x1xf32>
    %c0_22 = arith.constant 0 : index
    %c0_23 = arith.constant 0 : index
    %48 = vector.load %arg8[%c0_22, %c0_23] : memref<1x1xf32, #tpu.memory_space<vmem>>, vector<1x1xf32>
    tpu.vector_store %arg8[%c0_22, %c0_23], %47 {strides = array<i32>} : memref<1x1xf32, #tpu.memory_space<vmem>>, vector<1x1xf32>,
    %c1_i32 = arith.constant 1 : i32
    %49 = arith.cmpi eq, %arg1, %c1_i32 : i32
    %50 = arith.extui %49 : i1 to i32
    %c0_i32_24 = arith.constant 0 : i32
    %51 = arith.cmpi ne, %50, %c0_i32_24 : i32
    scf.if %51 {
      %c0_25 = arith.constant 0 : index
      %c0_26 = arith.constant 0 : index
      %52 = vector.load %arg7[%c0_25, %c0_26] : memref<8x128xf32, #tpu.memory_space<vmem>>, vector<8x128xf32>
      %cst_27 = arith.constant dense<0.000000e+00> : vector<8xf32>
      %53 = vector.multi_reduction <add>, %52, %cst_27 [1] : vector<8x128xf32> to vector<8xf32>
      %54 = vector.shape_cast %53 : vector<8xf32> to vector<8x1xf32>
      %55 = vector.extract_strided_slice %4 {offsets = [0, 4], sizes = [8, 1], strides = [1, 1]} : vector<8x8xf32> to vector<8x1xf32>
      %56 = arith.subf %55, %54 : vector<8x1xf32>
      %57 = math.absf %56 : vector<8x1xf32>
      %cst_28 = arith.constant dense<0.000000e+00> : vector<1xf32>
      %58 = vector.multi_reduction <add>, %57, %cst_28 [0] : vector<8x1xf32> to vector<1xf32>
      %59 = vector.shape_cast %58 : vector<1xf32> to vector<1x1xf32>
      %c0_29 = arith.constant 0 : index
      %c0_30 = arith.constant 0 : index
      %60 = vector.load %arg8[%c0_29, %c0_30] : memref<1x1xf32, #tpu.memory_space<vmem>>, vector<1x1xf32>
      %61 = math.absf %60 : vector<1x1xf32>
      %62 = arith.addf %59, %61 : vector<1x1xf32>
      %c0_31 = arith.constant 0 : index
      %c0_32 = arith.constant 0 : index
      %c0_33 = arith.constant 0 : index
      %63 = vector.load %arg6[%c0_31, %c0_32, %c0_33] : memref<1x1x1xf32, #tpu.memory_space<vmem>>, vector<1x1x1xf32>
      %64 = vector.shape_cast %63 : vector<1x1x1xf32> to vector<1x1xf32>
      %65 = vector.shape_cast %62 : vector<1x1xf32> to vector<1x1x1xf32>
      tpu.vector_store %arg6[%c0_31, %c0_32, %c0_33], %65 {strides = array<i32>} : memref<1x1x1xf32, #tpu.memory_space<vmem>>, vector<1x1x1xf32>,
    } else {
    }
    return
  }
  func.func @transform_0(%arg0: i32, %arg1: i32, %arg2: memref<2xf32, #tpu.memory_space<smem>>) -> (i32, i32, i32) {
    %c0_i32 = arith.constant 0 : i32
    %c0_i32_0 = arith.constant 0 : i32
    %c0_i32_1 = arith.constant 0 : i32
    return %arg0, %c0_i32, %c0_i32_0 : i32, i32, i32
  }
  func.func @transform_1(%arg0: i32, %arg1: i32, %arg2: memref<2xf32, #tpu.memory_space<smem>>) -> (i32, i32) {
    %c0_i32 = arith.constant 0 : i32
    %c0_i32_0 = arith.constant 0 : i32
    return %c0_i32, %arg1 : i32, i32
  }
  func.func @transform_2(%arg0: i32, %arg1: i32, %arg2: memref<2xf32, #tpu.memory_space<smem>>) -> (i32, i32, i32) {
    %c0_i32 = arith.constant 0 : i32
    %c0_i32_0 = arith.constant 0 : i32
    return %arg0, %c0_i32, %arg1 : i32, i32, i32
  }
  func.func @transform_3(%arg0: i32, %arg1: i32, %arg2: memref<2xf32, #tpu.memory_space<smem>>) -> (i32, i32, i32) {
    %c0_i32 = arith.constant 0 : i32
    %c0_i32_0 = arith.constant 0 : i32
    %c0_i32_1 = arith.constant 0 : i32
    return %arg0, %c0_i32, %c0_i32_0 : i32, i32, i32
  }
}

</mosaic_0001>

<llo_original>
// kernel: tpu_custom_call.1
$region0: #{tpu_custom_call.1}
  #allocation0 [shape = 'u32[]', space=smem, size = 0x4, offset = 0x4, fixed_abs, tag = 'smem constant byte address 0x4 - core index']
  #allocation1 [shape = 'u32[72,128]{1,0:T(1,128)}', space=vmem, size = 0x9000, scoped, tag = 'internal scratch']
  #allocation2 [shape = 'f32[8,128]{1,0:T(8,128)}', space=vmem, size = 0x1000, scoped, tag = 'scratch operand']
  #allocation3 [shape = 'f32[1,1]{1,0:T(1,128)}', space=vmem, size = 0x200, scoped, tag = 'scratch operand']
  #allocation4 [shape = 's32[1]{0}', space=sflag, size = 0x4, scoped, tag = 'scoped memory for tpu_custom_call.1']
  #allocation5 [shape = 'u8[512]{0}', space=smem, size = 0x200, scoped, tag = 'prefetched SMEM operand 0']
  %s0 = inlined_call_operand.hbm [shape: f32[2], index: 0, kind: input, shape index: {}]
  %s1 = inlined_call_operand.hbm [shape: f32[2,8,8], index: 1, kind: input, shape index: {}]
  %s2 = inlined_call_operand.hbm [shape: f32[8,256], index: 2, kind: input, shape index: {}]
  %s3 = inlined_call_operand.hbm [shape: f32[2,1,256], index: 3, kind: input, shape index: {}]
  %s4 = inlined_call_operand.vmem [shape: f32[2,1,1], index: 4, kind: output, shape index: {}]
  %s5 = sld [smem:[#allocation0]]
  $region65: #{tpu_custom_call.1} parent=0
    _
  %s7 = ssub.s32 1, %s5
  %s8 = scalar_select 0, %s7, %s5
  %s10 = sshll.u32 %s0, 4
  %s11 = int_to_ptr.hbm [resolvable:$true] %s10
  %13 = dma.hbm_to_smem %s11, 16, [#allocation5], [#allocation4]
  %15 = dma.done [#allocation4], 16
  %16 = sfence
  $region1: #{tpu_custom_call.1} parent=0
    #allocation6 [shape = 'u8[8192]{0}', space=vmem, size = 0x2000, scoped, tag = 'input window, operand 1']
    #allocation7 [shape = 's32[2]{0}', space=sflag, size = 0x8, scoped, tag = 'scoped memory for tpu_custom_call.1']
    #allocation8 [shape = 'u8[8192]{0}', space=vmem, size = 0x2000, scoped, tag = 'input window, operand 2']
    #allocation9 [shape = 's32[2]{0}', space=sflag, size = 0x8, scoped, tag = 'scoped memory for tpu_custom_call.1']
    #allocation10 [shape = 'u8[1024]{0}', space=vmem, size = 0x400, scoped, tag = 'input window, operand 3']
    %17 = vsyncpa [#allocation7], 0
    %s18 = scalar_lea.sflag [#allocation7], 1
    %19 = vsyncpa %s18, 0
    %20 = vsyncpa [#allocation9], 0
    %s21 = scalar_lea.sflag [#allocation9], 1
    %22 = vsyncpa %s21, 0
    loop: start=0, step=1, limit=6
    $region2: #{tpu_custom_call.1} parent=1 // loop_pre_header
      _
    $region3: #{tpu_custom_call.1} parent=1 // loop_header
      %s24 = sphi 0, %s28
      %p25 = scmp.ge.s32.totalorder %s24, 6
      %s31 = sphi 0, %s43
      %s32 = sphi 0, %s39
      %s33 = sphi 0, %s31
      %s34 = sphi 0, %s32
      %s35 = sphi 0, %s33
      %s36 = sphi 0, %s34
      %s46 = sphi 0, %s48
      %s49 = sphi 0, %s46
      %s50 = sphi 0, %s49
      %s66 = sphi 0, %s50
      %s72 = sphi 0, %s74
      %s75 = sphi 0, %s72
      %s76 = sphi 0, %s75
      %s92 = sphi 0, %s76
      %s100 = sphi 0, %s102
      %s103 = sphi 0, %s100
      %s104 = sphi 0, %s103
      %s120 = sphi 0, %s104
      %s126 = sphi 0, %s128
      %s129 = sphi 0, %s126
      %s130 = sphi 0, %s129
      %s146 = sphi 0, %s130
    $region4: #{tpu_custom_call.1} parent=1 // loop_header_branch
      %27 = sbr.rel (%p25) target = $region8
    $region5: #{tpu_custom_call.1} parent=1 // loop_body
      %s29 = ssub.s32 %s24, 1
      %s30 = ssub.s32 %s24, 2
      %s37 = sadd.s32 1, %s32
      %p38 = scmp.ge.s32.totalorder %s37, 2
      %s39 = scalar_select %p38, 0, %s37
      %s40 = sadd.s32 1, %s31
      %s41 = scalar_select %p38, %s40, %s31
      %p42 = scmp.ge.s32.totalorder %s41, 2
      %s43 = scalar_select %p42, 0, %s41
      %s44 = ssub.s32 %s31, %s43
      %p45 = scmp.eq.s32.totalorder %s44, 0
      %s47 = sadd.s32 %s46, 1
      %s48 = scalar_select %p45, %s46, %s47
      %p51 = pneg %p45
      %p52 = scmp.eq.s32.totalorder %s24, 3
      %p53 = por %p51, %p52
      %p54 = scmp.ne.s32.totalorder %s46, %s49
      %p55 = scmp.eq.s32.totalorder %s24, 0
      %p56 = por %p54, %p55
      %p57 = scmp.ne.s32.totalorder %s46, %s49
      %p58 = scmp.eq.s32.totalorder %s29, 3
      %p59 = por %p57, %p58
      %p60 = scmp.ne.s32.totalorder %s49, %s50
      %p61 = scmp.eq.s32.totalorder %s29, 0
      %p62 = por %p60, %p61
      %p63 = scmp.ne.s32.totalorder %s49, %s50
      %p64 = scmp.eq.s32.totalorder %s30, 3
      %p65 = por %p63, %p64
      %p67 = scmp.ne.s32.totalorder %s50, %s66
      %p68 = scmp.eq.s32.totalorder %s30, 0
      %p69 = por %p67, %p68
      %s70 = ssub.s32 %s32, %s39
      %p71 = scmp.eq.s32.totalorder %s70, 0
      %s73 = sadd.s32 %s72, 1
      %s74 = scalar_select %p71, %s72, %s73
      %p77 = pneg %p71
      %p78 = scmp.eq.s32.totalorder %s24, 3
      %p79 = por %p77, %p78
      %p80 = scmp.ne.s32.totalorder %s72, %s75
      %p81 = scmp.eq.s32.totalorder %s24, 0
      %p82 = por %p80, %p81
      %p83 = scmp.ne.s32.totalorder %s72, %s75
      %p84 = scmp.eq.s32.totalorder %s29, 3
      %p85 = por %p83, %p84
      %p86 = scmp.ne.s32.totalorder %s75, %s76
      %p87 = scmp.eq.s32.totalorder %s29, 0
      %p88 = por %p86, %p87
      %p89 = scmp.ne.s32.totalorder %s75, %s76
      %p90 = scmp.eq.s32.totalorder %s30, 3
      %p91 = por %p89, %p90
      %p93 = scmp.ne.s32.totalorder %s76, %s92
      %p94 = scmp.eq.s32.totalorder %s30, 0
      %p95 = por %p93, %p94
      %s96 = ssub.s32 %s31, %s43
      %s97 = ssub.s32 %s32, %s39
      %s98 = sor.u32 %s96, %s97
      %p99 = scmp.eq.s32.totalorder %s98, 0
      %s101 = sadd.s32 %s100, 1
      %s102 = scalar_select %p99, %s100, %s101
      %p105 = pneg %p99
      %p106 = scmp.eq.s32.totalorder %s24, 3
      %p107 = por %p105, %p106
      %p108 = scmp.ne.s32.totalorder %s100, %s103
      %p109 = scmp.eq.s32.totalorder %s24, 0
      %p110 = por %p108, %p109
      %p111 = scmp.ne.s32.totalorder %s100, %s103
      %p112 = scmp.eq.s32.totalorder %s29, 3
      %p113 = por %p111, %p112
      %p114 = scmp.ne.s32.totalorder %s103, %s104
      %p115 = scmp.eq.s32.totalorder %s29, 0
      %p116 = por %p114, %p115
      %p117 = scmp.ne.s32.totalorder %s103, %s104
      %p118 = scmp.eq.s32.totalorder %s30, 3
      %p119 = por %p117, %p118
      %p121 = scmp.ne.s32.totalorder %s104, %s120
      %p122 = scmp.eq.s32.totalorder %s30, 0
      %p123 = por %p121, %p122
      %s124 = ssub.s32 %s31, %s43
      %p125 = scmp.eq.s32.totalorder %s124, 0
      %s127 = sadd.s32 %s126, 1
      %s128 = scalar_select %p125, %s126, %s127
      %p131 = pneg %p125
      %p132 = scmp.eq.s32.totalorder %s24, 3
      %p133 = por %p131, %p132
      %p134 = scmp.ne.s32.totalorder %s126, %s129
      %p135 = scmp.eq.s32.totalorder %s24, 0
      %p136 = por %p134, %p135
      %p137 = scmp.ne.s32.totalorder %s126, %s129
      %p138 = scmp.eq.s32.totalorder %s29, 3
      %p139 = por %p137, %p138
      %p140 = scmp.ne.s32.totalorder %s129, %s130
      %p141 = scmp.eq.s32.totalorder %s29, 0
      %p142 = por %p140, %p141
      %p143 = scmp.ne.s32.totalorder %s129, %s130
      %p144 = scmp.eq.s32.totalorder %s30, 3
      %p145 = por %p143, %p144
      %p147 = scmp.ne.s32.totalorder %s130, %s146
      %p148 = scmp.eq.s32.totalorder %s30, 0
      %p149 = por %p147, %p148
      %p150 = scmp.le.s32.totalorder 1, %s24
      %p151 = scmp.lt.s32.totalorder %s24, 5
      %p152 = pnand %p150, %p151
      %p153 = pneg %p152
      // Predicated region
      $region9: #{tpu_custom_call.1} parent=5 // pred_check
        _
      $region10: #{tpu_custom_call.1} parent=5 // pred_check_branch
        %155 = sbr.rel (%p152) target = $region12
      $region11: #{tpu_custom_call.1} parent=5 // pred_region
        %s156 = ssub.s32 %s24, 1
      $region12: #{tpu_custom_call.1} parent=5 // pred_fallthru
        _
      %p157 = scmp.lt.s32.totalorder %s24, 4
      // Predicated region
      $region13: #{tpu_custom_call.1} parent=5 // pred_check
        %p158 = pneg %p157
      $region14: #{tpu_custom_call.1} parent=5 // pred_check_branch
        %160 = sbr.rel (%p158) target = $region16
      $region15: #{tpu_custom_call.1} parent=5 // pred_region
        // Predicated region
        $region17: #{tpu_custom_call.1} parent=15 // pred_check
          %p161 = pneg %p56
        $region18: #{tpu_custom_call.1} parent=15 // pred_check_branch
          %163 = sbr.rel (%p161) target = $region20
        $region19: #{tpu_custom_call.1} parent=15 // pred_region
          %s164 = sand.u32 %s46, 1
          %s165 = scalar_lea.sflag [#allocation7], %s164
          %s166 = sand.u32 %s46, 1
          %s167 = smul.addr %s166, 8
          %s168 = scalar_lea.vmem [#allocation6], %s167
          %170 = vsyncadd %s165, 0
          %s171 = smul.addr %s31, 8
          %s172 = scalar_lea.hbm %s1, %s171
          %s174 = sshll.u32 %s172, 4
          %s175 = int_to_ptr.hbm [resolvable:$true] %s174
          %s176 = sshll.u32 %s168, 4
          %s177 = int_to_ptr.vmem [resolvable:$true] %s176
          %179 = dma.hbm_to_vmem [thread:$0]  %s175, 128, %s177, %s165
        $region20: #{tpu_custom_call.1} parent=15 // pred_fallthru
          _
        // Predicated region
        $region21: #{tpu_custom_call.1} parent=15 // pred_check
          %p180 = pneg %p82
        $region22: #{tpu_custom_call.1} parent=15 // pred_check_branch
          %182 = sbr.rel (%p180) target = $region24
        $region23: #{tpu_custom_call.1} parent=15 // pred_region
          %s183 = sand.u32 %s24, 1
          %s184 = scalar_lea.sflag [#allocation9], %s183
          %s185 = sand.u32 %s72, 1
          %s186 = smul.addr %s185, 8
          %s187 = scalar_lea.vmem [#allocation8], %s186
          %189 = vsyncadd %s184, 0
          %s190 = smul.addr %s32, 8
          %s191 = scalar_lea.hbm %s2, %s190
          %s193 = sshll.u32 %s191, 4
          %s194 = int_to_ptr.hbm [resolvable:$true] %s193
          %s195 = sshll.u32 %s187, 4
          %s196 = int_to_ptr.vmem [resolvable:$true] %s195
          %198 = dma.hbm_to_vmem [thread:$0]  %s194, 128, %s196, %s184
        $region24: #{tpu_custom_call.1} parent=15 // pred_fallthru
          _
        // Predicated region
        $region25: #{tpu_custom_call.1} parent=15 // pred_check
          %p199 = pneg %p110
        $region26: #{tpu_custom_call.1} parent=15 // pred_check_branch
          %201 = sbr.rel (%p199) target = $region28
        $region27: #{tpu_custom_call.1} parent=15 // pred_region
          %s202 = sand.u32 %s24, 1
          %s203 = scalar_lea.sflag [#allocation9], %s202
          %s204 = sand.u32 %s100, 1
          %s205 = scalar_lea.vmem [#allocation10], %s204
          %207 = vsyncadd %s203, 0
          %s208 = smul.addr %s31, 2
          %s209 = sadd.s32 %s32, %s208
          %s210 = scalar_lea.hbm %s3, %s209
          %s212 = sshll.u32 %s210, 4
          %s213 = int_to_ptr.hbm [resolvable:$true] %s212
          %s214 = sshll.u32 %s205, 4
          %s215 = int_to_ptr.vmem [resolvable:$true] %s214
          %217 = dma.hbm_to_vmem [thread:$0]  %s213, 16, %s215, %s203
        $region28: #{tpu_custom_call.1} parent=15 // pred_fallthru
          _
      $region16: #{tpu_custom_call.1} parent=5 // pred_fallthru
        _
      %p218 = scmp.le.s32.totalorder 1, %s24
      %p219 = scmp.lt.s32.totalorder %s24, 5
      %p220 = pnand %p218, %p219
      %p221 = pneg %p220
      // Predicated region
      $region29: #{tpu_custom_call.1} parent=5 // pred_check
        _
      $region30: #{tpu_custom_call.1} parent=5 // pred_check_branch
        %223 = sbr.rel (%p220) target = $region32
      $region31: #{tpu_custom_call.1} parent=5 // pred_region
        %s224 = ssub.s32 %s24, 1
        %s225 = sand.u32 %s49, 1
        %s226 = scalar_lea.sflag [#allocation7], %s225
        %s227 = sand.u32 %s49, 1
        %s228 = smul.addr %s227, 8
        %s229 = scalar_lea.vmem [#allocation6], %s228
        // Predicated region
        $region33: #{tpu_custom_call.1} parent=31 // pred_check
          %p230 = pneg %p62
        $region34: #{tpu_custom_call.1} parent=31 // pred_check_branch
          %232 = sbr.rel (%p230) target = $region36
        $region35: #{tpu_custom_call.1} parent=31 // pred_region
          %234 = dma.done %s226, 128
        $region36: #{tpu_custom_call.1} parent=31 // pred_fallthru
          _
        %s235 = sand.u32 %s29, 1
        %s236 = scalar_lea.sflag [#allocation9], %s235
        %s237 = sand.u32 %s75, 1
        %s238 = smul.addr %s237, 8
        %s239 = scalar_lea.vmem [#allocation8], %s238
        // Predicated region
        $region37: #{tpu_custom_call.1} parent=31 // pred_check
          %p240 = pneg %p88
        $region38: #{tpu_custom_call.1} parent=31 // pred_check_branch
          %242 = sbr.rel (%p240) target = $region40
        $region39: #{tpu_custom_call.1} parent=31 // pred_region
          %244 = dma.done %s236, 128
        $region40: #{tpu_custom_call.1} parent=31 // pred_fallthru
          _
        %s245 = sand.u32 %s29, 1
        %s246 = scalar_lea.sflag [#allocation9], %s245
        %s247 = sand.u32 %s103, 1
        %s248 = scalar_lea.vmem [#allocation10], %s247
        // Predicated region
        $region41: #{tpu_custom_call.1} parent=31 // pred_check
          %p249 = pneg %p116
        $region42: #{tpu_custom_call.1} parent=31 // pred_check_branch
          %251 = sbr.rel (%p249) target = $region44
        $region43: #{tpu_custom_call.1} parent=31 // pred_region
          %253 = dma.done %s246, 16
        $region44: #{tpu_custom_call.1} parent=31 // pred_fallthru
          _
        %s254 = sand.u32 %s49, 1
        %s255 = scalar_lea.sflag [#allocation7], %s254
        %s256 = sand.u32 %s49, 1
        %s257 = smul.addr %s256, 8
        %s258 = scalar_lea.vmem [#allocation6], %s257
        %p259 = pneg %p62
        %p260 = pneg %p59
        %s261 = sand.u32 %s29, 1
        %s262 = scalar_lea.sflag [#allocation9], %s261
        %s263 = sand.u32 %s75, 1
        %s264 = smul.addr %s263, 8
        %s265 = scalar_lea.vmem [#allocation8], %s264
        %p266 = pneg %p88
        %p267 = pneg %p85
        %s268 = sand.u32 %s29, 1
        %s269 = scalar_lea.sflag [#allocation9], %s268
        %s270 = sand.u32 %s103, 1
        %s271 = scalar_lea.vmem [#allocation10], %s270
        %p272 = pneg %p116
        %p273 = pneg %p113
        %p274 = pneg %p142
        %p275 = pneg %p139
        %p276 = scmp.lt.s32.totalorder %s33, 1
        %s277 = scalar_select %p276, %s33, 1
        %s278 = scalar_lea.vmem %s4, %s277
        %p279 = scmp.lt.s32.totalorder %s33, 1
        %s280 = scalar_select %p279, %s33, 1
        %s281 = scalar_lea.vmem %s4, %s280
        %p282 = scmp.eq.s32.totalorder %s34, 0
        // Predicated region
        $region45: #{tpu_custom_call.1} parent=31 // pred_check
          %p283 = pneg %p282
        $region46: #{tpu_custom_call.1} parent=31 // pred_check_branch
          %285 = sbr.rel (%p283) target = $region48
        $region47: #{tpu_custom_call.1} parent=31 // pred_region
          %286 = vst [vmem:[#allocation2] sm:$0xff] 0.0
          %vm287 = vcmask 0
          %288 = vst.msk [vmem:[#allocation3] sm:$0x1] %vm287, 0.0
        $region48: #{tpu_custom_call.1} parent=31 // pred_fallthru
          _
        %v289 = vld [vmem:[%s229] sm:$0xff]
        %v290 = vld [vmem:[%s239] sm:$0xff]
        %v291 = vld [vmem:[%s248] sm:$0x1]
        %vm292 = vcmask 64512
        %v294 = vsel %vm292, %v289, 0
        %296 = vmatpush.msra.mxu0 0.0
        %297 = vmatpush.msra.mxu0 0.0
        %298 = vmatpush.msra.mxu0 0.0
        %299 = vmatpush.msra.mxu0 0.0
        %300 = vmatpush.msra.mxu0 0.0
        %301 = vmatpush.msra.mxu0 0.0
        %302 = vmatpush.msra.mxu0 0.0
        %303 = vmatpush.msra.mxu0 0.0
        %304 = vmatpush.msra.mxu0 0.0
        %305 = vmatpush.msra.mxu0 0.0
        %306 = vmatpush.msra.mxu0 0.0
        %307 = vmatpush.msra.mxu0 0.0
        %308 = vmatpush.msra.mxu0 0.0
        %309 = vmatpush.msra.mxu0 0.0
        %310 = vmatpush.msra.mxu0 0.0
        %v311 = vand.u32 %v290, 4294901760
        %312 = vmatpush.msra.mxu0 %v311
        %v313 = vand.u32 %v294, 4294901760
        %v314 = vsub.f32 %v294, %v313
        %v315 = vand.u32 %v314, 4294901760
        %v316 = vsub.f32 %v314, %v315
        %v317 = vand.u32 %v316, 4294901760
        %318 = vmatmul.f32.gmra.mxu0 %v317
        %v319 = vpop.f32.mrf.mxu0
        %v320 = vadd.f32 0.0, %v319
        %321 = vdwg.mxu0
        %322 = vmatpush.msra.mxu0 0.0
        %323 = vmatpush.msra.mxu0 0.0
        %324 = vmatpush.msra.mxu0 0.0
        %325 = vmatpush.msra.mxu0 0.0
        %326 = vmatpush.msra.mxu0 0.0
        %327 = vmatpush.msra.mxu0 0.0
        %328 = vmatpush.msra.mxu0 0.0
        %329 = vmatpush.msra.mxu0 0.0
        %330 = vmatpush.msra.mxu0 0.0
        %331 = vmatpush.msra.mxu0 0.0
        %332 = vmatpush.msra.mxu0 0.0
        %333 = vmatpush.msra.mxu0 0.0
        %334 = vmatpush.msra.mxu0 0.0
        %335 = vmatpush.msra.mxu0 0.0
        %336 = vmatpush.msra.mxu0 0.0
        %v337 = vand.u32 %v290, 4294901760
        %v338 = vsub.f32 %v290, %v337
        %v339 = vand.u32 %v338, 4294901760
        %v340 = vsub.f32 %v338, %v339
        %v341 = vand.u32 %v340, 4294901760
        %342 = vmatpush.msra.mxu0 %v341
        %v343 = vand.u32 %v294, 4294901760
        %344 = vmatmul.f32.gmra.mxu0 %v343
        %v345 = vpop.f32.mrf.mxu0
        %v346 = vadd.f32 %v320, %v345
        %347 = vdwg.mxu0
        %348 = vmatpush.msra.mxu0 0.0
        %349 = vmatpush.msra.mxu0 0.0
        %350 = vmatpush.msra.mxu0 0.0
        %351 = vmatpush.msra.mxu0 0.0
        %352 = vmatpush.msra.mxu0 0.0
        %353 = vmatpush.msra.mxu0 0.0
        %354 = vmatpush.msra.mxu0 0.0
        %355 = vmatpush.msra.mxu0 0.0
        %356 = vmatpush.msra.mxu0 0.0
        %357 = vmatpush.msra.mxu0 0.0
        %358 = vmatpush.msra.mxu0 0.0
        %359 = vmatpush.msra.mxu0 0.0
        %360 = vmatpush.msra.mxu0 0.0
        %361 = vmatpush.msra.mxu0 0.0
        %362 = vmatpush.msra.mxu0 0.0
        %v363 = vand.u32 %v290, 4294901760
        %v364 = vsub.f32 %v290, %v363
        %365 = vmatpush.msra.mxu0 %v364
        %v366 = vand.u32 %v294, 4294901760
        %v367 = vsub.f32 %v294, %v366
        %368 = vmatmul.f32.gmra.mxu0 %v367
        %v369 = vpop.f32.mrf.mxu0
        %v370 = vadd.f32 %v346, %v369
        %371 = vdwg.mxu0
        %372 = vmatpush.msra.mxu0 0.0
        %373 = vmatpush.msra.mxu0 0.0
        %374 = vmatpush.msra.mxu0 0.0
        %375 = vmatpush.msra.mxu0 0.0
        %376 = vmatpush.msra.mxu0 0.0
        %377 = vmatpush.msra.mxu0 0.0
        %378 = vmatpush.msra.mxu0 0.0
        %379 = vmatpush.msra.mxu0 0.0
        %380 = vmatpush.msra.mxu0 0.0
        %381 = vmatpush.msra.mxu0 0.0
        %382 = vmatpush.msra.mxu0 0.0
        %383 = vmatpush.msra.mxu0 0.0
        %384 = vmatpush.msra.mxu0 0.0
        %385 = vmatpush.msra.mxu0 0.0
        %386 = vmatpush.msra.mxu0 0.0
        %v387 = vand.u32 %v290, 4294901760
        %388 = vmatpush.msra.mxu0 %v387
        %v389 = vand.u32 %v294, 4294901760
        %v390 = vsub.f32 %v294, %v389
        %v391 = vand.u32 %v390, 4294901760
        %392 = vmatmul.f32.gmra.mxu0 %v391
        %v393 = vpop.f32.mrf.mxu0
        %v394 = vadd.f32 %v370, %v393
        %395 = vdwg.mxu0
        %396 = vmatpush.msra.mxu0 0.0
        %397 = vmatpush.msra.mxu0 0.0
        %398 = vmatpush.msra.mxu0 0.0
        %399 = vmatpush.msra.mxu0 0.0
        %400 = vmatpush.msra.mxu0 0.0
        %401 = vmatpush.msra.mxu0 0.0
        %402 = vmatpush.msra.mxu0 0.0
        %403 = vmatpush.msra.mxu0 0.0
        %404 = vmatpush.msra.mxu0 0.0
        %405 = vmatpush.msra.mxu0 0.0
        %406 = vmatpush.msra.mxu0 0.0
        %407 = vmatpush.msra.mxu0 0.0
        %408 = vmatpush.msra.mxu0 0.0
        %409 = vmatpush.msra.mxu0 0.0
        %410 = vmatpush.msra.mxu0 0.0
        %v411 = vand.u32 %v290, 4294901760
        %v412 = vsub.f32 %v290, %v411
        %v413 = vand.u32 %v412, 4294901760
        %414 = vmatpush.msra.mxu0 %v413
        %v415 = vand.u32 %v294, 4294901760
        %416 = vmatmul.f32.gmra.mxu0 %v415
        %v417 = vpop.f32.mrf.mxu0
        %v418 = vadd.f32 %v394, %v417
        %419 = vdwg.mxu0
        %420 = vmatpush.msra.mxu0 0.0
        %421 = vmatpush.msra.mxu0 0.0
        %422 = vmatpush.msra.mxu0 0.0
        %423 = vmatpush.msra.mxu0 0.0
        %424 = vmatpush.msra.mxu0 0.0
        %425 = vmatpush.msra.mxu0 0.0
        %426 = vmatpush.msra.mxu0 0.0
        %427 = vmatpush.msra.mxu0 0.0
        %428 = vmatpush.msra.mxu0 0.0
        %429 = vmatpush.msra.mxu0 0.0
        %430 = vmatpush.msra.mxu0 0.0
        %431 = vmatpush.msra.mxu0 0.0
        %432 = vmatpush.msra.mxu0 0.0
        %433 = vmatpush.msra.mxu0 0.0
        %434 = vmatpush.msra.mxu0 0.0
        %v435 = vand.u32 %v290, 4294901760
        %436 = vmatpush.msra.mxu0 %v435
        %v437 = vand.u32 %v294, 4294901760
        %438 = vmatmul.f32.gmra.mxu0 %v437
        %v439 = vpop.f32.mrf.mxu0
        %v440 = vadd.f32 %v418, %v439
        %441 = vdwg.mxu0
        %v442 = vrot.slane %v440, 4
        %v443 = vmax.f32 %v440, %v442
        %v444 = vrot.slane %v443, 2
        %v445 = vmax.f32 %v443, %v444
        %v446 = vrot.slane %v445, 1
        %v447 = vmax.f32 %v445, %v446
        %v448 = vsub.f32 0.0, %v447
        %v449 = vmul.f32 %v448, 128.0
        %v450 = vmax.f32 %v449, 0.0
        %s451 = sld [smem:[#allocation5 + %s33]]
        %v452 = vrsqrt.pop %v450
        %v453 = vmul.f32 %v452, %v450
        %v454 = vmul.f32 %v453, %v452
        %v455 = vmul.f32 0.5, %v454
        %v456 = vsub.f32 1.5, %v455
        %v457 = vmul.f32 %v452, %v456
        %v458 = vmul.f32 %v450, %v457
        %vm459 = vcmp.eq.f32.partialorder %v450, inf
        %v460 = vsel %vm459, %v450, %v458
        %vm461 = vcmp.eq.f32.partialorder %v450, 0.0
        %v462 = vand.u32 %v450, 2147483648
        %v463 = vsel %vm461, %v462, %v460
        %v464 = vstv %s451
        %v465 = vsub.f32 %v464, %v463
        %v466 = vmul.f32 %v465, %v465
        %v467 = vsub.f32 0.0, %v466
        %v468 = vmul.f32 %v467, 0.0078125
        %v469 = vmax.f32 %v447, %v468
        %v470 = vsub.f32 %v440, %v469
        %v471 = vmul.f32 %v470, 1.442695
        %v472 = vpow.pop %v471
        %v473 = vrot.slane %v472, 4
        %v474 = vadd.f32 %v472, %v473
        %v475 = vrot.slane %v474, 2
        %v476 = vadd.f32 %v474, %v475
        %v477 = vrot.slane %v476, 1
        %v478 = vadd.f32 %v476, %v477
        %v479 = vsub.f32 %v468, %v469
        %v480 = vmul.f32 %v479, 1.442695
        %v481 = vpow.pop %v480
        %v482 = vadd.f32 %v478, %v481
        %v483 = vrcp.pop %v482
        %v484 = vmul.f32 %v291, %v483
        %v486 = vperm.slane %v484, 0
        %v488 = vmul.f32 %v472, %v486
        %v489 = vld [vmem:[#allocation2] sm:$0xff]
        %v490 = vadd.f32 %v489, %v488
        %491 = vst [vmem:[#allocation2] sm:$0xff] %v490
        %v492 = vld [vmem:[#allocation3] sm:$0x1]
        %v493 = vmul.f32 %v481, %v484
        %vm494 = vcmask 1040384
        %v495 = vsel %vm494, %v493, 0.0
        %496 = vadd.xlane.f32.xlu0 %v495
        %v497 = vpop.xlane.xlu0 %496
        %v498 = vadd.f32 %v492, %v497
        %vm499 = vcmask 0
        %500 = vst.msk [vmem:[#allocation3] sm:$0x1] %vm499, %v498
        %p501 = scmp.eq.s32.totalorder %s34, 1
        // Predicated region
        $region49: #{tpu_custom_call.1} parent=31 // pred_check
          %p502 = pneg %p501
        $region50: #{tpu_custom_call.1} parent=31 // pred_check_branch
          %504 = sbr.rel (%p502) target = $region52
        $region51: #{tpu_custom_call.1} parent=31 // pred_region
          %v505 = vld [vmem:[#allocation2] sm:$0xff]
          %506 = vadd.xlane.f32.xlu0 %v505
          %v507 = vpop.xlane.xlu0 %506
          %v508 = vsub.f32 %v289, %v507
          %v509 = vand.u32 2147483647, %v508
          %vm510 = vcmask 39968
          %v511 = vsel %vm510, %v509, 0.0
          %v512 = vrot.slane %v511, 4
          %v513 = vadd.f32 %v511, %v512
          %v514 = vrot.slane %v513, 2
          %v515 = vadd.f32 %v513, %v514
          %v516 = vrot.slane %v515, 1
          %v517 = vadd.f32 %v515, %v516
          %v518 = vld [vmem:[#allocation3] sm:$0x1]
          %v519 = vand.u32 2147483647, %v518
          %v521 = vperm.slane %v519, 0
          %522 = vrot.lane.b32.xlu0 %v521, 4
          %v523 = vpop.permute.xlu0 %522
          %v525 = vadd.f32 %v517, %v523
          %527 = vrot.lane.b32.xlu0 %v525, 124
          %v528 = vpop.permute.xlu0 %527
          %530 = vst.msk [vmem:[%s281] sm:$0x1] %vm499, %v528
        $region52: #{tpu_custom_call.1} parent=31 // pred_fallthru
          _
        %p531 = scmp.lt.s32.totalorder %s33, 1
        %s532 = scalar_select %p531, %s33, 1
        %s533 = scalar_lea.vmem %s4, %s532
        // Predicated region
        $region53: #{tpu_custom_call.1} parent=31 // pred_check
          %p534 = pneg %p139
        $region54: #{tpu_custom_call.1} parent=31 // pred_check_branch
          %536 = sbr.rel (%p534) target = $region56
        $region55: #{tpu_custom_call.1} parent=31 // pred_region
          _
        $region56: #{tpu_custom_call.1} parent=31 // pred_fallthru
          _
      $region32: #{tpu_custom_call.1} parent=5 // pred_fallthru
        _
      %p537 = scmp.le.s32.totalorder 2, %s24
      // Predicated region
      $region57: #{tpu_custom_call.1} parent=5 // pred_check
        %p538 = pneg %p537
      $region58: #{tpu_custom_call.1} parent=5 // pred_check_branch
        %540 = sbr.rel (%p538) target = $region60
      $region59: #{tpu_custom_call.1} parent=5 // pred_region
        %s541 = ssub.s32 %s24, 2
        // Predicated region
        $region61: #{tpu_custom_call.1} parent=59 // pred_check
          %p542 = pneg %p145
        $region62: #{tpu_custom_call.1} parent=59 // pred_check_branch
          %544 = sbr.rel (%p542) target = $region64
        $region63: #{tpu_custom_call.1} parent=59 // pred_region
          %p545 = scmp.lt.s32.totalorder %s35, 1
          %s546 = scalar_select %p545, %s35, 1
          %s547 = scalar_lea.vmem %s4, %s546
        $region64: #{tpu_custom_call.1} parent=59 // pred_fallthru
          _
      $region60: #{tpu_custom_call.1} parent=5 // pred_fallthru
        _
    $region6: #{tpu_custom_call.1} parent=1 // loop_footer
      %s28 = sadd.s32 1, %s24
    $region7: #{tpu_custom_call.1} parent=1 // loop_footer_branch
      %23 = sbr.rel target = $region3
    $region8: #{tpu_custom_call.1} parent=1 // loop_exit
      _
    %548 = vsyncpa [#allocation7], 1
    %s549 = scalar_lea.sflag [#allocation7], 1
    %550 = vsyncpa %s549, 1
    %551 = vsyncpa [#allocation9], 1
    %s552 = scalar_lea.sflag [#allocation9], 1
    %553 = vsyncpa %s552, 1

</llo_original>
